<compile_context>
chip_gen: v5e
topology: v5e:2x2
jax: 0.10.0
libtpu: 0.0.40
codegen_flags: <defaults>
</compile_context>

<pallas_src>
import functools

import jax
import jax.numpy as jnp
from jax.experimental import pallas as pl
from jax.experimental.pallas import tpu as pltpu


def _round_up(x, m):
    return (x + m - 1) // m * m


def _probe_pipeline_mode():
    """pipeline_mode=pl.Buffered(k) is version-dependent; feature-probe it."""
    if not hasattr(pl, "Buffered"):
        return False
    try:
        pl.BlockSpec((8, 128), lambda i: (0, 0), pipeline_mode=pl.Buffered(1))
        return True
    except Exception:
        return False


_HAS_PIPELINE_MODE = _probe_pipeline_mode()


def _weight_spec(shape, index_map, single_buffer):
    if single_buffer and _HAS_PIPELINE_MODE:
        # Constant block index + single buffer: weights resident, half the VMEM.
        return pl.BlockSpec(shape, index_map, pipeline_mode=pl.Buffered(1))
    return pl.BlockSpec(shape, index_map)


def _vmem_capacity_bytes():
    try:
        return int(pltpu.get_tpu_info().vmem_capacity_bytes)
    except Exception:
        return 64 * 1024 * 1024  # conservative default (v7x per-TC VMEM)


# ----------------------------- kernels ------------------------------------- #

def _kernel_resident(x_ref, w1_ref, w2_ref, o_ref):
    """Whole-hidden weights resident in VMEM; grid = (batch tiles,)."""
    x = x_ref[...]
    h = jnp.dot(x, w1_ref[...], preferred_element_type=jnp.float32)
    h = h.astype(w2_ref.dtype)  # native bf16 MXU feed when weights are bf16
    out = x.astype(jnp.float32) + jnp.dot(h, w2_ref[...],
                                          preferred_element_type=jnp.float32)
    o_ref[...] = out.astype(o_ref.dtype)


def _kernel_tiled(x_ref, w1_ref, w2_ref, o_ref, acc_ref):
    """Hidden-reduction tiling; grid = (batch tiles [parallel], hidden tiles [arbitrary])."""
    k = pl.program_id(1)

    @pl.when(k == 0)
    def _():
        acc_ref[...] = x_ref[...].astype(jnp.float32)

    h = jnp.dot(x_ref[...], w1_ref[...], preferred_element_type=jnp.float32)
    h = h.astype(w2_ref.dtype)
    acc_ref[...] += jnp.dot(h, w2_ref[...], preferred_element_type=jnp.float32)

    @pl.when(k == pl.num_programs(1) - 1)
    def _():
        o_ref[...] = acc_ref[...].astype(o_ref.dtype)


# ----------------------------- wrapper ------------------------------------- #

@functools.partial(jax.jit, static_argnames=("block_b", "block_h", "vmem_budget_bytes"))
def approximator_forward(x, w1, w2, *, block_b=256, block_h=512,
                         vmem_budget_bytes=None):
    """out = x + x @ w1 @ w2, computed in a single fused Pallas TPU kernel."""
    B, d_model = x.shape
    dm_w, d_hidden = w1.shape
    assert dm_w == d_model and w2.shape == (d_hidden, d_model)

    it_x = jnp.dtype(x.dtype).itemsize
    it_w1 = jnp.dtype(w1.dtype).itemsize
    it_w2 = jnp.dtype(w2.dtype).itemsize
    it_o = it_x

    # --- per-generation VMEM budget (v5e/v6e 128 MiB -> ~96 MiB; v7x 64 -> ~48) ---
    vmem_cap = _vmem_capacity_bytes()
    vmem_limit = min(vmem_cap * 3 // 4, 100 * 1024 * 1024)
    if vmem_budget_bytes is None:
        budget = vmem_limit - 6 * 1024 * 1024  # headroom for Mosaic internal scratch
    else:
        budget = int(vmem_budget_bytes)       # test hook / manual override

    # --- lane-dense padding targets (zero padding is mathematically exact) ---
    dm_pad = _round_up(d_model, 128)
    dh_full = _round_up(d_hidden, 128)

    # --- batch tile: dtype-native sublane packing (8 f32 / 16 bf16 / 32 int8) ---
    sub = {4: 8, 2: 16, 1: 32}.get(it_x, 8)
    tb = min(_round_up(block_b, sub), _round_up(B, sub))

    # Footprint models (conservative: 2 buffers for every pipelined operand,
    # plus the f32 intermediate h and the f32 accumulator where applicable).
    def resident_bytes(tb_):
        w = 2 * (dm_pad * dh_full * it_w1 + dh_full * dm_pad * it_w2)
        io = 2 * tb_ * dm_pad * it_x + 2 * tb_ * dm_pad * it_o
        h = tb_ * dh_full * 4
        return w + io + h

    def tiled_bytes(tb_, th_):
        w = 2 * (dm_pad * th_ * it_w1 + th_ * dm_pad * it_w2)
        io = 2 * tb_ * dm_pad * it_x + 2 * tb_ * dm_pad * it_o
        acc = tb_ * dm_pad * 4
        h = tb_ * th_ * 4
        return w + io + acc + h

    # --- residency decision: keep whole W1/W2 in VMEM whenever it fits -------
    tb_floor = max(sub, min(64, tb))
    tb_res = tb
    while tb_res > tb_floor and resident_bytes(tb_res) > budget:
        tb_res = max(tb_floor, _round_up(tb_res // 2, sub))
    resident = resident_bytes(tb_res) <= budget

    if resident:
        tb = tb_res
        th = dh_full
        dh_pad = dh_full
    else:
        # Hidden-reduction tiling; keep th deep, pad d_hidden UP to th.
        th = min(_round_up(block_h, 128), dh_full)
        while th > 128 and tiled_bytes(tb, th) > budget:
            th = _round_up(th // 2, 128)
        while tiled_bytes(tb, th) > budget:
            nxt = max(sub, _round_up(tb // 2, sub))
            if nxt >= tb:
                break
            tb = nxt
        dh_pad = _round_up(d_hidden, th)
        # TODO(synk): try pipeline_mode=pl.Buffered(3) on the weight specs here
        # when the per-chunk MXU work is small relative to the weight DMA.

    # --- megacore: ensure >=2 batch tiles so v7x's two TCs both get work -----
    b_sub = _round_up(B, sub)
    if b_sub <= tb and b_sub >= 2 * sub:
        tb = _round_up((b_sub + 1) // 2, sub)

    b_pad = _round_up(B, tb)
    n_b = b_pad // tb
    n_k = dh_pad // th

    # --- zero-pad operands (exact) -------------------------------------------
    pad_b = b_pad - B
    pad_m = dm_pad - d_model
    pad_h = dh_pad - d_hidden
    if pad_b or pad_m:
        x = jnp.pad(x, ((0, pad_b), (0, pad_m)))
    if pad_m or pad_h:
        w1 = jnp.pad(w1, ((0, pad_m), (0, pad_h)))
        w2 = jnp.pad(w2, ((0, pad_h), (0, pad_m)))

    # --- cost estimate with the true weight HBM traffic ----------------------
    w_bytes = dm_pad * dh_pad * it_w1 + dh_pad * dm_pad * it_w2
    w_traffic = w_bytes * (n_b if n_k > 1 else 1)
    io_bytes = b_pad * dm_pad * (it_x + it_o)
    cost = pl.CostEstimate(
        flops=int(4 * b_pad * dm_pad * dh_pad + b_pad * dm_pad),
        transcendentals=0,
        bytes_accessed=int(io_bytes + w_traffic),
    )

    compiler_params_1d = pltpu.CompilerParams(
        dimension_semantics=("parallel",), vmem_limit_bytes=vmem_limit)
    compiler_params_2d = pltpu.CompilerParams(
        dimension_semantics=("parallel", "arbitrary"), vmem_limit_bytes=vmem_limit)

    if n_k == 1:
        out = pl.pallas_call(
            _kernel_resident,
            out_shape=jax.ShapeDtypeStruct((b_pad, dm_pad), x.dtype),
            grid_spec=pltpu.PrefetchScalarGridSpec(
                num_scalar_prefetch=0,
                grid=(n_b,),
                in_specs=[
                    pl.BlockSpec((tb, dm_pad), lambda i: (i, 0)),
                    _weight_spec((dm_pad, dh_pad), lambda i: (0, 0), single_buffer=True),
                    _weight_spec((dh_pad, dm_pad), lambda i: (0, 0), single_buffer=True),
                ],
                out_specs=pl.BlockSpec((tb, dm_pad), lambda i: (i, 0)),
            ),
            compiler_params=compiler_params_1d,
            cost_estimate=cost,
        )(x, w1, w2)
    else:
        out = pl.pallas_call(
            _kernel_tiled,
            out_shape=jax.ShapeDtypeStruct((b_pad, dm_pad), x.dtype),
            grid_spec=pltpu.PrefetchScalarGridSpec(
                num_scalar_prefetch=0,
                grid=(n_b, n_k),
                in_specs=[
                    # x: constant over k -> DMA'd once per batch tile.
                    pl.BlockSpec((tb, dm_pad), lambda i, k: (i, 0)),
                    pl.BlockSpec((dm_pad, th), lambda i, k: (0, k)),
                    pl.BlockSpec((th, dm_pad), lambda i, k: (k, 0)),
                ],
                out_specs=pl.BlockSpec((tb, dm_pad), lambda i, k: (i, 0)),
                scratch_shapes=[pltpu.VMEM((tb, dm_pad), jnp.float32)],
            ),
            compiler_params=compiler_params_2d,
            cost_estimate=cost,
        )(x, w1, w2)

    if pad_b or pad_m:
        out = out[:B, :d_model]
    return out


def init_params(key, d_model, d_hidden, dtype=jnp.float32):
    """kaiming_uniform_ equivalent (a=0 -> bound = sqrt(6 / fan_in), fan_in = dim 1)."""
    k1, k2 = jax.random.split(key)
    bound1 = (6.0 / d_hidden) ** 0.5   # W1: (d_model, d_hidden) -> fan_in = d_hidden
    bound2 = (6.0 / d_model) ** 0.5    # W2: (d_hidden, d_model) -> fan_in = d_model
    w1 = jax.random.uniform(k1, (d_model, d_hidden), dtype, -bound1, bound1)
    w2 = jax.random.uniform(k2, (d_hidden, d_model), dtype, -bound2, bound2)
    return w1, w2


if __name__ == "__main__":
    key = jax.random.PRNGKey(0)
    k1, k2, k3, k4, k5, k6 = jax.random.split(key, 6)

    # --- Test 1: small module-scale shapes (f32), weight-resident path ---
    B, d_model, d_hidden = 8, 128, 32
    x = jax.random.normal(k1, (B, d_model), jnp.float32)
    w1, w2 = init_params(k2, d_model, d_hidden)
    out = approximator_forward(x, w1, w2)
    jax.block_until_ready(out)
    ref = x + x @ w1 @ w2
    assert out.shape == ref.shape == (B, d_model)
    assert jnp.allclose(out, ref, atol=1e-4, rtol=1e-4), "test1 mismatch"

    # --- Test 2: forces hidden-reduction tiling + batch / d_model / d_hidden padding ---
    B, d_model, d_hidden = 300, 160, 320
    x = jax.random.normal(k3, (B, d_model), jnp.float32)
    w1, w2 = init_params(k4, d_model, d_hidden)
    out = approximator_forward(x, w1, w2, block_b=128, block_h=128,
                               vmem_budget_bytes=1 * 1024 * 1024)
    jax.block_until_ready(out)
    ref = x + x @ w1 @ w2
    assert out.shape == ref.shape == (B, d_model)
    assert jnp.allclose(out, ref, atol=1e-3, rtol=1e-3), "test2 mismatch"

    # --- Test 3: bf16 storage (native bf16 MXU, f32 accumulation), 2 batch tiles ---
    B, d_model, d_hidden = 256, 128, 64
    xb = jax.random.normal(k5, (B, d_model), jnp.float32).astype(jnp.bfloat16)
    w1b, w2b = init_params(k6, d_model, d_hidden)
    w1b, w2b = w1b.astype(jnp.bfloat16), w2b.astype(jnp.bfloat16)
    outb = approximator_forward(xb, w1b, w2b)
    jax.block_until_ready(outb)
    h_ref = jnp.dot(xb, w1b, preferred_element_type=jnp.float32).astype(jnp.bfloat16)
    refb = xb.astype(jnp.float32) + jnp.dot(h_ref, w2b, preferred_element_type=jnp.float32)
    assert outb.shape == (B, d_model) and outb.dtype == jnp.bfloat16
    assert jnp.allclose(outb.astype(jnp.float32), refb, atol=3e-2, rtol=3e-2), "test3 mismatch"

    print("KERNEL_OK")
</pallas_src>

<mosaic_0001>
module attributes {stable_mosaic.version = 11 : i64} {
  func.func @_kernel_resident(%arg0: i32, %arg1: memref<8x128xf32, #tpu.memory_space<vmem>>, %arg2: memref<128x128xf32, #tpu.memory_space<vmem>>, %arg3: memref<128x128xf32, #tpu.memory_space<vmem>>, %arg4: memref<8x128xf32, #tpu.memory_space<vmem>>) attributes {dimension_semantics = [#tpu.dimension_semantics<parallel>], iteration_bounds = array<i64: 1>, scalar_prefetch = 0 : i64, scratch_operands = 0 : i64, tpu.core_type = #tpu.core_type<tc>, window_params = [{transform_indices = @transform_0, window_bounds = array<i64: 8, 128>}, {pipeline_mode = #tpu.pipeline_mode<synchronous>, transform_indices = @transform_1, window_bounds = array<i64: 128, 128>}, {pipeline_mode = #tpu.pipeline_mode<synchronous>, transform_indices = @transform_2, window_bounds = array<i64: 128, 128>}, {transform_indices = @transform_3, window_bounds = array<i64: 8, 128>}]} {
    %c0 = arith.constant 0 : index
    %c0_0 = arith.constant 0 : index
    %0 = vector.load %arg1[%c0, %c0_0] : memref<8x128xf32, #tpu.memory_space<vmem>>, vector<8x128xf32>
    %c0_1 = arith.constant 0 : index
    %c0_2 = arith.constant 0 : index
    %1 = vector.load %arg2[%c0_1, %c0_2] : memref<128x128xf32, #tpu.memory_space<vmem>>, vector<128x128xf32>
    %cst = arith.constant dense<0.000000e+00> : vector<8x128xf32>
    %2 = tpu.matmul %0, %1, %cst {dimension_numbers = #tpu.dot_dimension_numbers<[1], [0], [0], [1], [0, 0, 1, 1], [], []>} : vector<8x128xf32>, vector<128x128xf32>, vector<8x128xf32> -> vector<8x128xf32>
    %c0_3 = arith.constant 0 : index
    %c0_4 = arith.constant 0 : index
    %3 = vector.load %arg3[%c0_3, %c0_4] : memref<128x128xf32, #tpu.memory_space<vmem>>, vector<128x128xf32>
    %cst_5 = arith.constant dense<0.000000e+00> : vector<8x128xf32>
    %4 = tpu.matmul %2, %3, %cst_5 {dimension_numbers = #tpu.dot_dimension_numbers<[1], [0], [0], [1], [0, 0, 1, 1], [], []>} : vector<8x128xf32>, vector<128x128xf32>, vector<8x128xf32> -> vector<8x128xf32>
    %5 = arith.addf %0, %4 : vector<8x128xf32>
    %c0_6 = arith.constant 0 : index
    %c0_7 = arith.constant 0 : index
    %6 = vector.load %arg4[%c0_6, %c0_7] : memref<8x128xf32, #tpu.memory_space<vmem>>, vector<8x128xf32>
    tpu.vector_store %arg4[%c0_6, %c0_7], %5 {strides = array<i32>} : memref<8x128xf32, #tpu.memory_space<vmem>>, vector<8x128xf32>,
    return
  }
  func.func @transform_0(%arg0: i32) -> (i32, i32) {
    %c0_i32 = arith.constant 0 : i32
    %c0_i32_0 = arith.constant 0 : i32
    return %arg0, %c0_i32 : i32, i32
  }
  func.func @transform_1(%arg0: i32) -> (i32, i32) {
    %c0_i32 = arith.constant 0 : i32
    %c0_i32_0 = arith.constant 0 : i32
    %c0_i32_1 = arith.constant 0 : i32
    return %c0_i32, %c0_i32_0 : i32, i32
  }
  func.func @transform_2(%arg0: i32) -> (i32, i32) {
    %c0_i32 = arith.constant 0 : i32
    %c0_i32_0 = arith.constant 0 : i32
    %c0_i32_1 = arith.constant 0 : i32
    return %c0_i32, %c0_i32_0 : i32, i32
  }
  func.func @transform_3(%arg0: i32) -> (i32, i32) {
    %c0_i32 = arith.constant 0 : i32
    %c0_i32_0 = arith.constant 0 : i32
    return %arg0, %c0_i32 : i32, i32
  }
}

</mosaic_0001>

<llo_original>
// kernel: approximator_forward.1
$region0: #{approximator_forward.1}
  #allocation0 [shape = 'u32[]', space=smem, size = 0x4, offset = 0x4, fixed_abs, tag = 'smem constant byte address 0x4 - core index']
  #allocation1 [shape = 'u32[72,128]{1,0:T(1,128)}', space=vmem, size = 0x9000, scoped, tag = 'internal scratch']
  %s0 = inlined_call_operand.vmem [shape: f32[8,128], index: 0, kind: input, shape index: {}]
  %s1 = inlined_call_operand.vmem [shape: f32[128,128], index: 1, kind: input, shape index: {}]
  %s2 = inlined_call_operand.vmem [shape: f32[128,128], index: 2, kind: input, shape index: {}]
  %s3 = inlined_call_operand.hbm [shape: f32[8,128], index: 3, kind: output, shape index: {}]
  %s4 = sld [smem:[#allocation0]]
  $region22: #{approximator_forward.1} parent=0
    _
  %s6 = ssub.s32 1, %s4
  %s7 = scalar_select 0, %s6, %s4
  $region1: #{approximator_forward.1} parent=0
    #allocation2 [shape = 'u8[4096]{0}', space=vmem, size = 0x1000, scoped, tag = 'output window, operand 0, single buffered']
    #allocation3 [shape = 's32[1]{0}', space=sflag, size = 0x4, scoped, tag = 'scoped memory for approximator_forward.1']
    %8 = vsyncpa [#allocation3], 0
    // Predicated region
    $region2: #{approximator_forward.1} parent=1 // pred_check
      _
    $region3: #{approximator_forward.1} parent=1 // pred_check_branch
      %10 = sbr.rel (0) target = $region5
    $region4: #{approximator_forward.1} parent=1 // pred_region
      _
    $region5: #{approximator_forward.1} parent=1 // pred_fallthru
      _
    // Predicated region
    $region6: #{approximator_forward.1} parent=1 // pred_check
      _
    $region7: #{approximator_forward.1} parent=1 // pred_check_branch
      %12 = sbr.rel (0) target = $region9
    $region8: #{approximator_forward.1} parent=1 // pred_region
      _
    $region9: #{approximator_forward.1} parent=1 // pred_fallthru
      _
    // Predicated region
    $region10: #{approximator_forward.1} parent=1 // pred_check
      _
    $region11: #{approximator_forward.1} parent=1 // pred_check_branch
      %14 = sbr.rel (0) target = $region13
    $region12: #{approximator_forward.1} parent=1 // pred_region
      _
    $region13: #{approximator_forward.1} parent=1 // pred_fallthru
      _
    %v15 = vld [vmem:[%s0] sm:$0xff]
    %v16 = vld [vmem:[%s1] sm:$0xff]
    %v17 = vld [vmem:[%s1 + $0x8] sm:$0xff]
    %v18 = vld [vmem:[%s1 + $0x10] sm:$0xff]
    %v19 = vld [vmem:[%s1 + $0x18] sm:$0xff]
    %v20 = vld [vmem:[%s1 + $0x20] sm:$0xff]
    %v21 = vld [vmem:[%s1 + $0x28] sm:$0xff]
    %v22 = vld [vmem:[%s1 + $0x30] sm:$0xff]
    %v23 = vld [vmem:[%s1 + $0x38] sm:$0xff]
    %v24 = vld [vmem:[%s1 + $0x40] sm:$0xff]
    %v25 = vld [vmem:[%s1 + $0x48] sm:$0xff]
    %v26 = vld [vmem:[%s1 + $0x50] sm:$0xff]
    %v27 = vld [vmem:[%s1 + $0x58] sm:$0xff]
    %v28 = vld [vmem:[%s1 + $0x60] sm:$0xff]
    %v29 = vld [vmem:[%s1 + $0x68] sm:$0xff]
    %v30 = vld [vmem:[%s1 + $0x70] sm:$0xff]
    %v31 = vld [vmem:[%s1 + $0x78] sm:$0xff]
    %32 = vmatpush.msra.mxu0 %v31
    %33 = vmatpush.msra.mxu0 %v30
    %34 = vmatpush.msra.mxu0 %v29
    %35 = vmatpush.msra.mxu0 %v28
    %36 = vmatpush.msra.mxu0 %v27
    %37 = vmatpush.msra.mxu0 %v26
    %38 = vmatpush.msra.mxu0 %v25
    %39 = vmatpush.msra.mxu0 %v24
    %40 = vmatpush.msra.mxu0 %v23
    %41 = vmatpush.msra.mxu0 %v22
    %42 = vmatpush.msra.mxu0 %v21
    %43 = vmatpush.msra.mxu0 %v20
    %44 = vmatpush.msra.mxu0 %v19
    %45 = vmatpush.msra.mxu0 %v18
    %46 = vmatpush.msra.mxu0 %v17
    %47 = vmatpush.msra.mxu0 %v16
    %48 = vmatmul.f32.gmra.mxu0 %v15
    %v49 = vpop.f32.mrf.mxu0
    %v50 = vadd.f32 0.0, %v49
    %51 = vdwg.mxu0
    %v52 = vld [vmem:[%s2] sm:$0xff]
    %v53 = vld [vmem:[%s2 + $0x8] sm:$0xff]
    %v54 = vld [vmem:[%s2 + $0x10] sm:$0xff]
    %v55 = vld [vmem:[%s2 + $0x18] sm:$0xff]
    %v56 = vld [vmem:[%s2 + $0x20] sm:$0xff]
    %v57 = vld [vmem:[%s2 + $0x28] sm:$0xff]
    %v58 = vld [vmem:[%s2 + $0x30] sm:$0xff]
    %v59 = vld [vmem:[%s2 + $0x38] sm:$0xff]
    %v60 = vld [vmem:[%s2 + $0x40] sm:$0xff]
    %v61 = vld [vmem:[%s2 + $0x48] sm:$0xff]
    %v62 = vld [vmem:[%s2 + $0x50] sm:$0xff]
    %v63 = vld [vmem:[%s2 + $0x58] sm:$0xff]
    %v64 = vld [vmem:[%s2 + $0x60] sm:$0xff]
    %v65 = vld [vmem:[%s2 + $0x68] sm:$0xff]
    %v66 = vld [vmem:[%s2 + $0x70] sm:$0xff]
    %v67 = vld [vmem:[%s2 + $0x78] sm:$0xff]
    %68 = vmatpush.msra.mxu0 %v67
    %69 = vmatpush.msra.mxu0 %v66
    %70 = vmatpush.msra.mxu0 %v65
    %71 = vmatpush.msra.mxu0 %v64
    %72 = vmatpush.msra.mxu0 %v63
    %73 = vmatpush.msra.mxu0 %v62
    %74 = vmatpush.msra.mxu0 %v61
    %75 = vmatpush.msra.mxu0 %v60
    %76 = vmatpush.msra.mxu0 %v59
    %77 = vmatpush.msra.mxu0 %v58
    %78 = vmatpush.msra.mxu0 %v57
    %79 = vmatpush.msra.mxu0 %v56
    %80 = vmatpush.msra.mxu0 %v55
    %81 = vmatpush.msra.mxu0 %v54
    %82 = vmatpush.msra.mxu0 %v53
    %83 = vmatpush.msra.mxu0 %v52
    %84 = vmatmul.f32.gmra.mxu0 %v50
    %v85 = vpop.f32.mrf.mxu0
    %v86 = vadd.f32 0.0, %v85
    %87 = vdwg.mxu0
    %v88 = vadd.f32 %v15, %v86
    %89 = vst [vmem:[#allocation2] sm:$0xff] %v88
    // Predicated region
    $region14: #{approximator_forward.1} parent=1 // pred_check
      _
    $region15: #{approximator_forward.1} parent=1 // pred_check_branch
      %91 = sbr.rel (0) target = $region17
    $region16: #{approximator_forward.1} parent=1 // pred_region
      %93 = vsyncadd [#allocation3], 0
      %s95 = sshll.u32 [#allocation2], 4
      %s96 = int_to_ptr.vmem [resolvable:$true] %s95
      %s97 = sshll.u32 %s3, 4
      %s98 = int_to_ptr.hbm [resolvable:$true] %s97
      %100 = dma.vmem_to_hbm [thread:$0]  %s96, 128, %s98, [#allocation3]
    $region17: #{approximator_forward.1} parent=1 // pred_fallthru
      _
    // Predicated region
    $region18: #{approximator_forward.1} parent=1 // pred_check
      _
    $region19: #{approximator_forward.1} parent=1 // pred_check_branch
      %102 = sbr.rel (0) target = $region21
    $region20: #{approximator_forward.1} parent=1 // pred_region
      %104 = dma.done [#allocation3], 128
    $region21: #{approximator_forward.1} parent=1 // pred_fallthru
      _
    %105 = vsyncpa [#allocation3], 1

</llo_original>
